<compile_context>
chip_gen: v5e
topology: v5e:2x2
jax: 0.10.0
libtpu: 0.0.40
codegen_flags: <defaults>
</compile_context>

<pallas_src>
import math
import numpy as np
import jax
import jax.numpy as jnp
from jax.experimental import pallas as pl
from jax.experimental.pallas import tpu as pltpu

# ------------------------- small, consistent config -------------------------
IMG = 16          # img_size
PATCH = 8         # patch_size
IN_CHANS = 3
EMBED_DIM = 32
DEPTH = 2
NUM_HEADS = 4
GEO_DIM = 0
DEC_DIM = 16
DEC_DEPTH = 1
DEC_HEADS = 4
MLP_RATIO = 4.0

GRID = IMG // PATCH
L1 = GRID * GRID              # patches per frame
L = 3 * L1                    # total temporal patches
PATCH_DIM = PATCH * PATCH * IN_CHANS
LN_EPS = 1e-5                 # nn.LayerNorm default

MM_DT = jnp.bfloat16          # matmul-input dtype (f32 accumulation everywhere)
NEG = -1e30                   # additive attention mask value


# ------------------------- sincos pos-embed glue (numpy, init-time only) -------------------------
def _get_1d_sincos(embed_dim, pos):
    omega = np.arange(embed_dim // 2, dtype=np.float64) / (embed_dim / 2.0)
    omega = 1.0 / 10000 ** omega
    out = np.einsum("m,d->md", pos.reshape(-1).astype(np.float64), omega)
    return np.concatenate([np.sin(out), np.cos(out)], axis=1)


def get_2d_sincos_pos_embed(embed_dim, grid_size, cls_token=False):
    gh = np.arange(grid_size, dtype=np.float32)
    gw = np.arange(grid_size, dtype=np.float32)
    grid = np.meshgrid(gw, gh)                                   # w goes first
    grid = np.stack(grid, axis=0).reshape(2, 1, grid_size, grid_size)
    emb_h = _get_1d_sincos(embed_dim // 2, grid[0])
    emb_w = _get_1d_sincos(embed_dim // 2, grid[1])
    pe = np.concatenate([emb_h, emb_w], axis=1)
    if cls_token:
        pe = np.concatenate([np.zeros((1, embed_dim)), pe], axis=0)
    return pe.astype(np.float32)


# ------------------------- in-kernel building blocks -------------------------
def _ln(v, w, b):
    mu = jnp.mean(v, axis=-1, keepdims=True)
    var = jnp.mean(jnp.square(v - mu), axis=-1, keepdims=True)
    return (v - mu) * jax.lax.rsqrt(var + LN_EPS) * w + b


def _mm(a, w_bf16):
    # bf16 MXU inputs, f32 accumulation.
    return jnp.dot(a.astype(MM_DT), w_bf16, preferred_element_type=jnp.float32)


def _block_slab(xs, attn_bias, num_heads, head_dim, p):
    """One pre-norm transformer block on a [rows, dim] slab (rows = block_n * T_pad).

    attn_bias is a [rows, rows] additive mask (0 within the same sample / real tokens,
    -1e30 elsewhere) so cross-sample and padding keys receive exactly zero attention.
    """
    (ln1w, ln1b, qkvw, qkvb, projw, projb, ln2w, ln2b, f1w, f1b, f2w, f2b) = p
    dim = num_heads * head_dim
    scale = head_dim ** -0.5

    # --- attention branch: ONE fused QKV matmul, ONE output-proj matmul ---
    h = _ln(xs, ln1w, ln1b)
    qkv = _mm(h, qkvw) + qkvb                                     # [rows, 3*dim]
    heads = []
    for hh in range(num_heads):
        o = hh * head_dim
        q = qkv[:, o:o + head_dim]
        k = qkv[:, dim + o:dim + o + head_dim]
        v = qkv[:, 2 * dim + o:2 * dim + o + head_dim]
        s = jax.lax.dot_general(q.astype(MM_DT), k.astype(MM_DT),
                                (((1,), (1,)), ((), ())),
                                preferred_element_type=jnp.float32) * scale + attn_bias
        s = s - jnp.max(s, axis=-1, keepdims=True)
        e = jnp.exp(s)
        pattn = e * pl.reciprocal(jnp.sum(e, axis=-1, keepdims=True), approx=True)
        heads.append(jnp.dot(pattn.astype(MM_DT), v.astype(MM_DT),
                             preferred_element_type=jnp.float32))
    att = jnp.concatenate(heads, axis=-1)                         # [rows, dim]
    xs = xs + _mm(att, projw) + projb

    # --- MLP branch ---
    h2 = _ln(xs, ln2w, ln2b)
    m = _mm(h2, f1w) + f1b
    # TODO(synk): PyTorch nn.GELU is exact (erf); tanh approximation used for Mosaic-safe lowering.
    m = jax.nn.gelu(m, approximate=True)
    xs = xs + _mm(m, f2w) + f2b
    return xs


# ------------------------- Pallas kernels -------------------------
def _patch_embed_kernel(x_ref, w_ref, b_ref, pos_ref, o_ref):
    # One fused matmul per batch block: [bn*L, PD] @ [PD, E] + b + pos.
    o_ref[...] = _mm(x_ref[...], w_ref[...]) + b_ref[...] + pos_ref[...]


def _make_encoder_kernel(depth, num_heads, head_dim):
    def kernel(x_ref, bias_ref,
               ln1w, ln1b, qkvw, qkvb, pw, pb, ln2w, ln2b, f1w, f1b, f2w, f2b,
               nw, nb, dew, deb, o_ref):
        xs = x_ref[...]                                           # [rows, E]
        bias = bias_ref[...]
        for blk in range(depth):                                  # depth=2: keep unrolled
            p = (ln1w[blk], ln1b[blk], qkvw[blk], qkvb[blk], pw[blk], pb[blk],
                 ln2w[blk], ln2b[blk], f1w[blk], f1b[blk], f2w[blk], f2b[blk])
            xs = _block_slab(xs, bias, num_heads, head_dim, p)
        xs = _ln(xs, nw[...], nb[...])                            # encoder final LayerNorm
        o_ref[...] = _mm(xs, dew[...]) + deb[...]                 # fused decoder_embed
    return kernel


def _make_decoder_kernel(depth, num_heads, head_dim):
    def kernel(x_ref, pos_ref, bias_ref,
               ln1w, ln1b, qkvw, qkvb, pw, pb, ln2w, ln2b, f1w, f1b, f2w, f2b,
               nw, nb, prw, prb, tgt_ref,
               pred_ref, err_ref):
        xs = x_ref[...] + pos_ref[...]                            # [rows, DEC]
        bias = bias_ref[...]
        for blk in range(depth):
            p = (ln1w[blk], ln1b[blk], qkvw[blk], qkvb[blk], pw[blk], pb[blk],
                 ln2w[blk], ln2b[blk], f1w[blk], f1b[blk], f2w[blk], f2b[blk])
            xs = _block_slab(xs, bias, num_heads, head_dim, p)
        xs = _ln(xs, nw[...], nb[...])                            # decoder LayerNorm
        pred = _mm(xs, prw[...]) + prb[...]                       # prediction head
        pred_ref[...] = pred
        # per-token squared error computed from the in-register prediction (heavy lane
        # reduction fused here; the trivial [N, L] mask-sum / divide stays in JAX because
        # the batch grid is "parallel" and cannot share a scalar accumulator).
        d = pred - tgt_ref[...]
        err_ref[...] = jnp.mean(d * d, axis=-1, keepdims=True)
    return kernel


# ------------------------- Pallas wrappers -------------------------
_BLOCK_KEYS = ("ln1_w", "ln1_b", "qkv_w", "qkv_b", "proj_w", "proj_b",
               "ln2_w", "ln2_b", "fc1_w", "fc1_b", "fc2_w", "fc2_b")

_PAR = pltpu.CompilerParams(dimension_semantics=("parallel",))


def _rep_spec(a):
    zero = (0,) * a.ndim
    return pl.BlockSpec(a.shape, lambda i, _z=zero: _z)


def run_patch_embed(x2d, w_bf16, b, pos_bn, block_rows):
    rows, pd = x2d.shape
    e = w_bf16.shape[1]
    return pl.pallas_call(
        _patch_embed_kernel,
        out_shape=jax.ShapeDtypeStruct((rows, e), jnp.float32),
        grid=(rows // block_rows,),
        in_specs=[pl.BlockSpec((block_rows, pd), lambda i: (i, 0)),
                  _rep_spec(w_bf16), _rep_spec(b), _rep_spec(pos_bn)],
        out_specs=pl.BlockSpec((block_rows, e), lambda i: (i, 0)),
        compiler_params=_PAR,
    )(x2d, w_bf16, b, pos_bn)


def run_encoder(x2d, attn_bias, stacked, norm_w, norm_b, dec_w, dec_b,
                num_heads, block_rows):
    rows, dim = x2d.shape
    depth = stacked["ln1_w"].shape[0]
    out_dim = dec_w.shape[1]
    args = [x2d, attn_bias] + [stacked[k] for k in _BLOCK_KEYS] + [norm_w, norm_b, dec_w, dec_b]
    in_specs = ([pl.BlockSpec((block_rows, dim), lambda i: (i, 0)), _rep_spec(attn_bias)]
                + [_rep_spec(stacked[k]) for k in _BLOCK_KEYS]
                + [_rep_spec(norm_w), _rep_spec(norm_b), _rep_spec(dec_w), _rep_spec(dec_b)])
    return pl.pallas_call(
        _make_encoder_kernel(depth, num_heads, dim // num_heads),
        out_shape=jax.ShapeDtypeStruct((rows, out_dim), jnp.float32),
        grid=(rows // block_rows,),
        in_specs=in_specs,
        out_specs=pl.BlockSpec((block_rows, out_dim), lambda i: (i, 0)),
        compiler_params=_PAR,
    )(*args)


def run_decoder(x2d, pos_bn, attn_bias, stacked, norm_w, norm_b, pred_w, pred_b,
                target2d, num_heads, block_rows):
    rows, dim = x2d.shape
    depth = stacked["ln1_w"].shape[0]
    pd = pred_w.shape[1]
    args = ([x2d, pos_bn, attn_bias] + [stacked[k] for k in _BLOCK_KEYS]
            + [norm_w, norm_b, pred_w, pred_b, target2d])
    in_specs = ([pl.BlockSpec((block_rows, dim), lambda i: (i, 0)),
                 _rep_spec(pos_bn), _rep_spec(attn_bias)]
                + [_rep_spec(stacked[k]) for k in _BLOCK_KEYS]
                + [_rep_spec(norm_w), _rep_spec(norm_b), _rep_spec(pred_w), _rep_spec(pred_b),
                   pl.BlockSpec((block_rows, pd), lambda i: (i, 0))])
    return pl.pallas_call(
        _make_decoder_kernel(depth, num_heads, dim // num_heads),
        out_shape=(jax.ShapeDtypeStruct((rows, pd), jnp.float32),
                   jax.ShapeDtypeStruct((rows, 1), jnp.float32)),
        grid=(rows // block_rows,),
        in_specs=in_specs,
        out_specs=(pl.BlockSpec((block_rows, pd), lambda i: (i, 0)),
                   pl.BlockSpec((block_rows, 1), lambda i: (i, 0))),
        compiler_params=_PAR,
    )(*args)


# ------------------------- parameter preparation (host/JAX side) -------------------------
def _stack_blocks(blocks):
    out = {}
    for k in _BLOCK_KEYS:
        s = jnp.stack([bp[k] for bp in blocks], axis=0)
        if k in ("qkv_w", "proj_w", "fc1_w", "fc2_w"):
            s = s.astype(MM_DT)                                   # matmul weights in bf16
        out[k] = s
    return out


def _attn_bias(block_n, t_pad, t_real):
    """Block-diagonal additive attention mask for a [block_n * t_pad] token slab."""
    rows = block_n * t_pad
    idx = np.arange(rows)
    same = (idx[:, None] // t_pad) == (idx[None, :] // t_pad)
    valid_key = (idx[None, :] % t_pad) < t_real
    ok = same & valid_key
    return jnp.asarray(np.where(ok, 0.0, NEG), dtype=jnp.float32)


# ------------------------- JAX glue -------------------------
def patchify(frame):
    # frame: [N, C, H, W] -> [N, h*w, p*p*C] (matches torch patchify ordering)
    N, C, H, W = frame.shape
    h = w = H // PATCH
    x = frame.reshape(N, C, h, PATCH, w, PATCH)
    x = jnp.einsum("nchpwq->nhwpqc", x)
    return x.reshape(N, h * w, PATCH * PATCH * C)


def random_masking(x, mask_ratio, key):
    # TODO(synk): data-dependent gather (argsort + take_along_axis) stays in JAX; a Pallas
    # equivalent would require scalar-prefetch/DMA gather which is not worth it at this size.
    N, Lt, D = x.shape
    len_keep = int(Lt * (1 - mask_ratio))
    noise = jax.random.uniform(key, (N, Lt))
    ids_shuffle = jnp.argsort(noise, axis=1)
    ids_restore = jnp.argsort(ids_shuffle, axis=1)
    ids_keep = ids_shuffle[:, :len_keep]
    x_masked = jnp.take_along_axis(x, jnp.repeat(ids_keep[:, :, None], D, axis=2), axis=1)
    mask = jnp.ones((N, Lt), jnp.float32).at[:, :len_keep].set(0.0)
    mask = jnp.take_along_axis(mask, ids_restore, axis=1)
    return x_masked, mask, ids_restore


def init_params():
    rng = np.random.default_rng(0)

    def xavier(shape):
        a = math.sqrt(6.0 / (shape[0] + shape[1]))
        return jnp.asarray(rng.uniform(-a, a, size=shape), dtype=jnp.float32)

    def normal(shape, std=0.02):
        return jnp.asarray(rng.normal(0.0, std, size=shape), dtype=jnp.float32)

    zeros = lambda s: jnp.zeros(s, jnp.float32)
    ones = lambda s: jnp.ones(s, jnp.float32)

    def block(dim):
        hid = int(dim * MLP_RATIO)
        return dict(
            ln1_w=ones((1, dim)), ln1_b=zeros((1, dim)),
            qkv_w=xavier((dim, 3 * dim)), qkv_b=zeros((1, 3 * dim)),
            proj_w=xavier((dim, dim)), proj_b=zeros((1, dim)),
            ln2_w=ones((1, dim)), ln2_b=zeros((1, dim)),
            fc1_w=xavier((dim, hid)), fc1_b=zeros((1, hid)),
            fc2_w=xavier((hid, dim)), fc2_b=zeros((1, dim)),
        )

    return dict(
        patch_w=xavier((PATCH_DIM, EMBED_DIM)), patch_b=zeros((1, EMBED_DIM)),
        cls_token=normal((1, 1, EMBED_DIM)),
        pos_embed=jnp.asarray(
            get_2d_sincos_pos_embed(EMBED_DIM - GEO_DIM, GRID, cls_token=True)[None]),
        enc_blocks=[block(EMBED_DIM) for _ in range(DEPTH)],
        norm_w=ones((1, EMBED_DIM)), norm_b=zeros((1, EMBED_DIM)),
        dec_embed_w=xavier((EMBED_DIM, DEC_DIM)), dec_embed_b=zeros((1, DEC_DIM)),
        mask_token=normal((1, 1, DEC_DIM)),
        dec_pos_embed=jnp.asarray(
            get_2d_sincos_pos_embed(DEC_DIM, GRID, cls_token=True)[None]),
        dec_blocks=[block(DEC_DIM) for _ in range(DEC_DEPTH)],
        dec_norm_w=ones((1, DEC_DIM)), dec_norm_b=zeros((1, DEC_DIM)),
        dec_pred_w=xavier((DEC_DIM, PATCH_DIM)), dec_pred_b=zeros((1, PATCH_DIM)),
    )


def _pad_tokens(x, t_pad):
    # [N, T, D] -> zero-pad tokens to t_pad per sample
    return jnp.pad(x, ((0, 0), (0, t_pad - x.shape[1]), (0, 0)))


def mae_forward(params, imgs, ge, anchor, res, mask_ratio, mask_key, block_n=2):
    # ge / anchor / res are unused with isAnchor=False, isGeoembeded=False, isScale=False
    # (the resolution-aware sincos / geo-digit branches of the torch code are dead here).
    del ge, anchor, res
    N = imgs.shape[0]
    BN = block_n
    assert N % BN == 0 and (BN * L) % 8 == 0

    # ---------------- patchify once (reused as loss target) ----------------
    patches = jnp.concatenate([patchify(imgs[:, t]) for t in range(3)], axis=1)   # [N, L, PD]

    # ---------------- fused patch-embed + pos add (kernel 1) ----------------
    pos = jnp.tile(params["pos_embed"][0, 1:, :], (3, 1))                         # [L, E]
    pos_bn = jnp.tile(pos, (BN, 1))                                               # [BN*L, E]
    x = run_patch_embed(patches.reshape(N * L, PATCH_DIM),
                        params["patch_w"].astype(MM_DT), params["patch_b"], pos_bn,
                        block_rows=BN * L).reshape(N, L, EMBED_DIM)

    # ---------------- random masking + cls token (JAX gather) ----------------
    x, mask, ids_restore = random_masking(x, mask_ratio, mask_key)
    cls_tokens = jnp.broadcast_to(params["cls_token"], (N, 1, EMBED_DIM))
    x = jnp.concatenate([cls_tokens, x], axis=1)                                  # [N, T_e, E]
    T_e = x.shape[1]
    T_pe = ((T_e + 7) // 8) * 8
    x2d = _pad_tokens(x, T_pe).reshape(N * T_pe, EMBED_DIM)

    # ---------------- fused encoder + final LN + decoder_embed (kernel 2) ----------------
    enc_stacked = _stack_blocks(params["enc_blocks"])
    enc_bias = _attn_bias(BN, T_pe, T_e)
    lat = run_encoder(x2d, enc_bias, enc_stacked,
                      params["norm_w"], params["norm_b"],
                      params["dec_embed_w"].astype(MM_DT), params["dec_embed_b"],
                      NUM_HEADS, block_rows=BN * T_pe)
    lat = lat.reshape(N, T_pe, DEC_DIM)[:, :T_e, :]                               # [N, T_e, DEC]

    # ---------------- token re-assembly (JAX gather) ----------------
    n_mask = ids_restore.shape[1] + 1 - lat.shape[1]
    mask_tokens = jnp.broadcast_to(params["mask_token"], (N, n_mask, DEC_DIM))
    x_ = jnp.concatenate([lat[:, 1:, :], mask_tokens], axis=1)
    idx = jnp.repeat(ids_restore[:, :, None], DEC_DIM, axis=2)
    x_ = jnp.take_along_axis(x_, idx, axis=1)
    xd = jnp.concatenate([lat[:, :1, :], x_], axis=1)                             # [N, L+1, DEC]
    T_d = L + 1
    T_pd = ((T_d + 7) // 8) * 8
    xd2d = _pad_tokens(xd, T_pd).reshape(N * T_pd, DEC_DIM)

    dec_pos = jnp.concatenate(
        [params["dec_pos_embed"][0, :1, :],
         jnp.tile(params["dec_pos_embed"][0, 1:, :], (3, 1))], axis=0)            # [T_d, DEC]
    dec_pos_bn = jnp.tile(jnp.pad(dec_pos, ((0, T_pd - T_d), (0, 0))), (BN, 1))   # [BN*T_pd, DEC]

    target_full = jnp.concatenate(
        [jnp.zeros((N, 1, PATCH_DIM), jnp.float32), patches], axis=1)             # [N, T_d, PD]
    target2d = _pad_tokens(target_full, T_pd).reshape(N * T_pd, PATCH_DIM)

    # ---------------- fused decoder + LN + pred head + loss numerator (kernel 3) ----------------
    dec_stacked = _stack_blocks(params["dec_blocks"])
    dec_bias = _attn_bias(BN, T_pd, T_d)
    pred_pad, err_pad = run_decoder(xd2d, dec_pos_bn, dec_bias, dec_stacked,
                                    params["dec_norm_w"], params["dec_norm_b"],
                                    params["dec_pred_w"].astype(MM_DT), params["dec_pred_b"],
                                    target2d, DEC_HEADS, block_rows=BN * T_pd)
    pred = pred_pad.reshape(N, T_pd, PATCH_DIM)[:, 1:T_d, :]                      # [N, L, p*p*C]
    errs = err_pad.reshape(N, T_pd)[:, 1:T_d]                                     # [N, L]
    loss = jnp.sum(errs * mask) / jnp.sum(mask)
    return loss, pred, mask


# ------------------------- main -------------------------
if __name__ == "__main__":
    key = jax.random.PRNGKey(0)
    k_img, k_mask = jax.random.split(key)

    N = 4
    imgs = jax.random.normal(k_img, (N, 3, IN_CHANS, IMG, IMG), dtype=jnp.float32)
    ge = None                                          # geo digit strings (unused in this config)
    anchor = jnp.zeros((N, 3), dtype=jnp.int32)        # unused (isAnchor=False)
    res = jnp.ones((N, 3), dtype=jnp.float32)          # unused (isScale/isGeoembeded=False)

    params = init_params()
    loss, pred, mask = mae_forward(params, imgs, ge, anchor, res, 0.75, k_mask, block_n=2)
    jax.block_until_ready((loss, pred, mask))

    assert pred.shape == (N, L, PATCH_DIM)
    assert mask.shape == (N, L)
    assert loss.shape == ()
    assert bool(jnp.isfinite(loss))
    print("KERNEL_OK")
</pallas_src>

<mosaic_0001>
module attributes {stable_mosaic.version = 11 : i64} {
  func.func @_patch_embed_kernel(%arg0: i32, %arg1: memref<24x192xf32, #tpu.memory_space<vmem>>, %arg2: memref<192x32xbf16, #tpu.memory_space<vmem>>, %arg3: memref<1x32xf32, #tpu.memory_space<vmem>>, %arg4: memref<24x32xf32, #tpu.memory_space<vmem>>, %arg5: memref<24x32xf32, #tpu.memory_space<vmem>>) attributes {dimension_semantics = [#tpu.dimension_semantics<parallel>], iteration_bounds = array<i64: 2>, scalar_prefetch = 0 : i64, scratch_operands = 0 : i64, tpu.core_type = #tpu.core_type<tc>, window_params = [{transform_indices = @transform_0, window_bounds = array<i64: 24, 192>}, {pipeline_mode = #tpu.pipeline_mode<synchronous>, transform_indices = @transform_1, window_bounds = array<i64: 192, 32>}, {pipeline_mode = #tpu.pipeline_mode<synchronous>, transform_indices = @transform_2, window_bounds = array<i64: 1, 32>}, {pipeline_mode = #tpu.pipeline_mode<synchronous>, transform_indices = @transform_3, window_bounds = array<i64: 24, 32>}, {transform_indices = @transform_4, window_bounds = array<i64: 24, 32>}]} {
    %c0 = arith.constant 0 : index
    %c0_0 = arith.constant 0 : index
    %0 = vector.load %arg1[%c0, %c0_0] : memref<24x192xf32, #tpu.memory_space<vmem>>, vector<24x192xf32>
    %c0_1 = arith.constant 0 : index
    %c0_2 = arith.constant 0 : index
    %1 = vector.load %arg2[%c0_1, %c0_2] : memref<192x32xbf16, #tpu.memory_space<vmem>>, vector<192x32xbf16>
    %2 = arith.truncf %0 : vector<24x192xf32> to vector<24x192xbf16>
    %cst = arith.constant dense<0.000000e+00> : vector<24x32xf32>
    %3 = tpu.matmul %2, %1, %cst {dimension_numbers = #tpu.dot_dimension_numbers<[1], [0], [0], [1], [0, 0, 1, 1], [], []>} : vector<24x192xbf16>, vector<192x32xbf16>, vector<24x32xf32> -> vector<24x32xf32>
    %c0_3 = arith.constant 0 : index
    %c0_4 = arith.constant 0 : index
    %4 = vector.load %arg3[%c0_3, %c0_4] : memref<1x32xf32, #tpu.memory_space<vmem>>, vector<1x32xf32>
    %5 = vector.broadcast %4 : vector<1x32xf32> to vector<24x32xf32>
    %6 = arith.addf %3, %5 : vector<24x32xf32>
    %c0_5 = arith.constant 0 : index
    %c0_6 = arith.constant 0 : index
    %7 = vector.load %arg4[%c0_5, %c0_6] : memref<24x32xf32, #tpu.memory_space<vmem>>, vector<24x32xf32>
    %8 = arith.addf %6, %7 : vector<24x32xf32>
    %c0_7 = arith.constant 0 : index
    %c0_8 = arith.constant 0 : index
    %9 = vector.load %arg5[%c0_7, %c0_8] : memref<24x32xf32, #tpu.memory_space<vmem>>, vector<24x32xf32>
    tpu.vector_store %arg5[%c0_7, %c0_8], %8 {strides = array<i32>} : memref<24x32xf32, #tpu.memory_space<vmem>>, vector<24x32xf32>,
    return
  }
  func.func @transform_0(%arg0: i32) -> (i32, i32) {
    %c0_i32 = arith.constant 0 : i32
    %c0_i32_0 = arith.constant 0 : i32
    return %arg0, %c0_i32 : i32, i32
  }
  func.func @transform_1(%arg0: i32) -> (i32, i32) {
    %c0_i32 = arith.constant 0 : i32
    %c0_i32_0 = arith.constant 0 : i32
    %c0_i32_1 = arith.constant 0 : i32
    return %c0_i32, %c0_i32_0 : i32, i32
  }
  func.func @transform_2(%arg0: i32) -> (i32, i32) {
    %c0_i32 = arith.constant 0 : i32
    %c0_i32_0 = arith.constant 0 : i32
    %c0_i32_1 = arith.constant 0 : i32
    return %c0_i32, %c0_i32_0 : i32, i32
  }
  func.func @transform_3(%arg0: i32) -> (i32, i32) {
    %c0_i32 = arith.constant 0 : i32
    %c0_i32_0 = arith.constant 0 : i32
    %c0_i32_1 = arith.constant 0 : i32
    return %c0_i32, %c0_i32_0 : i32, i32
  }
  func.func @transform_4(%arg0: i32) -> (i32, i32) {
    %c0_i32 = arith.constant 0 : i32
    %c0_i32_0 = arith.constant 0 : i32
    return %arg0, %c0_i32 : i32, i32
  }
}

</mosaic_0001>

<llo_original>
// kernel: tpu_custom_call.1
$region0: #{tpu_custom_call.1}
  #allocation0 [shape = 'u32[]', space=smem, size = 0x4, offset = 0x4, fixed_abs, tag = 'smem constant byte address 0x4 - core index']
  #allocation1 [shape = 'u32[72,128]{1,0:T(1,128)}', space=vmem, size = 0x9000, scoped, tag = 'internal scratch']
  %s0 = inlined_call_operand.vmem [shape: f32[48,192], index: 0, kind: input, shape index: {}]
  %s1 = inlined_call_operand.vmem [shape: bf16[192,32], index: 1, kind: input, shape index: {}]
  %s2 = inlined_call_operand.vmem [shape: f32[1,32], index: 2, kind: input, shape index: {}]
  %s3 = inlined_call_operand.vmem [shape: f32[24,32], index: 3, kind: input, shape index: {}]
  %s4 = inlined_call_operand.vmem [shape: f32[48,32], index: 4, kind: output, shape index: {}]
  %s5 = sld [smem:[#allocation0]]
  $region49: #{tpu_custom_call.1} parent=0
    _
  %s7 = ssub.s32 1, %s5
  %s8 = scalar_select 0, %s7, %s5
  loop: start=0, step=1, limit=4
  $region2: #{tpu_custom_call.1} parent=0 // loop_pre_header
    _
  $region3: #{tpu_custom_call.1} parent=0 // loop_header
    %s10 = sphi 0, %s14
    %p11 = scmp.ge.s32.totalorder %s10, 4
    %s20 = sphi 0, %s22
    %s23 = sphi 0, %s20
    %s24 = sphi 0, %s23
    %s40 = sphi 0, %s24
    %s44 = sphi 0, %s44
    %s46 = sphi 0, %s44
    %s47 = sphi 0, %s46
    %s61 = sphi 0, %s47
    %s65 = sphi 0, %s65
    %s67 = sphi 0, %s65
    %s68 = sphi 0, %s67
    %s82 = sphi 0, %s68
    %s86 = sphi 0, %s86
    %s88 = sphi 0, %s86
    %s89 = sphi 0, %s88
    %s103 = sphi 0, %s89
    %s109 = sphi 0, %s111
    %s112 = sphi 0, %s109
    %s113 = sphi 0, %s112
    %s129 = sphi 0, %s113
  $region4: #{tpu_custom_call.1} parent=0 // loop_header_branch
    %13 = sbr.rel (%p11) target = $region8
  $region5: #{tpu_custom_call.1} parent=0 // loop_body
    %s15 = ssub.s32 %s10, 1
    %s16 = ssub.s32 %s10, 2
    %s17 = sadd.s32 %s10, 1
    %s18 = ssub.s32 %s10, %s17
    %p19 = scmp.eq.s32.totalorder %s18, 0
    %s21 = sadd.s32 %s20, 1
    %s22 = scalar_select %p19, %s20, %s21
    %p25 = pneg %p19
    %p26 = scmp.eq.s32.totalorder %s10, 1
    %p27 = por %p25, %p26
    %p28 = scmp.ne.s32.totalorder %s20, %s23
    %p29 = scmp.eq.s32.totalorder %s10, 0
    %p30 = por %p28, %p29
    %p31 = scmp.ne.s32.totalorder %s20, %s23
    %p32 = scmp.eq.s32.totalorder %s15, 1
    %p33 = por %p31, %p32
    %p34 = scmp.ne.s32.totalorder %s23, %s24
    %p35 = scmp.eq.s32.totalorder %s15, 0
    %p36 = por %p34, %p35
    %p37 = scmp.ne.s32.totalorder %s23, %s24
    %p38 = scmp.eq.s32.totalorder %s16, 1
    %p39 = por %p37, %p38
    %p41 = scmp.ne.s32.totalorder %s24, %s40
    %p42 = scmp.eq.s32.totalorder %s16, 0
    %p43 = por %p41, %p42
    %s45 = sadd.s32 %s44, 1
    %p48 = scmp.eq.s32.totalorder %s10, 1
    %p49 = scmp.ne.s32.totalorder %s44, %s46
    %p50 = scmp.eq.s32.totalorder %s10, 0
    %p51 = por %p49, %p50
    %p52 = scmp.ne.s32.totalorder %s44, %s46
    %p53 = scmp.eq.s32.totalorder %s15, 1
    %p54 = por %p52, %p53
    %p55 = scmp.ne.s32.totalorder %s46, %s47
    %p56 = scmp.eq.s32.totalorder %s15, 0
    %p57 = por %p55, %p56
    %p58 = scmp.ne.s32.totalorder %s46, %s47
    %p59 = scmp.eq.s32.totalorder %s16, 1
    %p60 = por %p58, %p59
    %p62 = scmp.ne.s32.totalorder %s47, %s61
    %p63 = scmp.eq.s32.totalorder %s16, 0
    %p64 = por %p62, %p63
    %s66 = sadd.s32 %s65, 1
    %p69 = scmp.eq.s32.totalorder %s10, 1
    %p70 = scmp.ne.s32.totalorder %s65, %s67
    %p71 = scmp.eq.s32.totalorder %s10, 0
    %p72 = por %p70, %p71
    %p73 = scmp.ne.s32.totalorder %s65, %s67
    %p74 = scmp.eq.s32.totalorder %s15, 1
    %p75 = por %p73, %p74
    %p76 = scmp.ne.s32.totalorder %s67, %s68
    %p77 = scmp.eq.s32.totalorder %s15, 0
    %p78 = por %p76, %p77
    %p79 = scmp.ne.s32.totalorder %s67, %s68
    %p80 = scmp.eq.s32.totalorder %s16, 1
    %p81 = por %p79, %p80
    %p83 = scmp.ne.s32.totalorder %s68, %s82
    %p84 = scmp.eq.s32.totalorder %s16, 0
    %p85 = por %p83, %p84
    %s87 = sadd.s32 %s86, 1
    %p90 = scmp.eq.s32.totalorder %s10, 1
    %p91 = scmp.ne.s32.totalorder %s86, %s88
    %p92 = scmp.eq.s32.totalorder %s10, 0
    %p93 = por %p91, %p92
    %p94 = scmp.ne.s32.totalorder %s86, %s88
    %p95 = scmp.eq.s32.totalorder %s15, 1
    %p96 = por %p94, %p95
    %p97 = scmp.ne.s32.totalorder %s88, %s89
    %p98 = scmp.eq.s32.totalorder %s15, 0
    %p99 = por %p97, %p98
    %p100 = scmp.ne.s32.totalorder %s88, %s89
    %p101 = scmp.eq.s32.totalorder %s16, 1
    %p102 = por %p100, %p101
    %p104 = scmp.ne.s32.totalorder %s89, %s103
    %p105 = scmp.eq.s32.totalorder %s16, 0
    %p106 = por %p104, %p105
    %s107 = ssub.s32 %s10, %s17
    %p108 = scmp.eq.s32.totalorder %s107, 0
    %s110 = sadd.s32 %s109, 1
    %s111 = scalar_select %p108, %s109, %s110
    %p114 = pneg %p108
    %p115 = scmp.eq.s32.totalorder %s10, 1
    %p116 = por %p114, %p115
    %p117 = scmp.ne.s32.totalorder %s109, %s112
    %p118 = scmp.eq.s32.totalorder %s10, 0
    %p119 = por %p117, %p118
    %p120 = scmp.ne.s32.totalorder %s109, %s112
    %p121 = scmp.eq.s32.totalorder %s15, 1
    %p122 = por %p120, %p121
    %p123 = scmp.ne.s32.totalorder %s112, %s113
    %p124 = scmp.eq.s32.totalorder %s15, 0
    %p125 = por %p123, %p124
    %p126 = scmp.ne.s32.totalorder %s112, %s113
    %p127 = scmp.eq.s32.totalorder %s16, 1
    %p128 = por %p126, %p127
    %p130 = scmp.ne.s32.totalorder %s113, %s129
    %p131 = scmp.eq.s32.totalorder %s16, 0
    %p132 = por %p130, %p131
    %p133 = scmp.le.s32.totalorder 1, %s10
    %p134 = scmp.lt.s32.totalorder %s10, 3
    %p135 = pnand %p133, %p134
    %p136 = pneg %p135
    // Predicated region
    $region9: #{tpu_custom_call.1} parent=5 // pred_check
      _
    $region10: #{tpu_custom_call.1} parent=5 // pred_check_branch
      %138 = sbr.rel (%p135) target = $region12
    $region11: #{tpu_custom_call.1} parent=5 // pred_region
      %s139 = ssub.s32 %s10, 1
      // Predicated region
      $region13: #{tpu_custom_call.1} parent=11 // pred_check
        %p140 = pneg %p57
      $region14: #{tpu_custom_call.1} parent=11 // pred_check_branch
        %142 = sbr.rel (%p140) target = $region16
      $region15: #{tpu_custom_call.1} parent=11 // pred_region
        _
      $region16: #{tpu_custom_call.1} parent=11 // pred_fallthru
        _
      // Predicated region
      $region17: #{tpu_custom_call.1} parent=11 // pred_check
        %p143 = pneg %p78
      $region18: #{tpu_custom_call.1} parent=11 // pred_check_branch
        %145 = sbr.rel (%p143) target = $region20
      $region19: #{tpu_custom_call.1} parent=11 // pred_region
        _
      $region20: #{tpu_custom_call.1} parent=11 // pred_fallthru
        _
      // Predicated region
      $region21: #{tpu_custom_call.1} parent=11 // pred_check
        %p146 = pneg %p99
      $region22: #{tpu_custom_call.1} parent=11 // pred_check_branch
        %148 = sbr.rel (%p146) target = $region24
      $region23: #{tpu_custom_call.1} parent=11 // pred_region
        _
      $region24: #{tpu_custom_call.1} parent=11 // pred_fallthru
        _
    $region12: #{tpu_custom_call.1} parent=5 // pred_fallthru
      _
    %p149 = scmp.lt.s32.totalorder %s10, 2
    // Predicated region
    $region25: #{tpu_custom_call.1} parent=5 // pred_check
      %p150 = pneg %p149
    $region26: #{tpu_custom_call.1} parent=5 // pred_check_branch
      %152 = sbr.rel (%p150) target = $region28
    $region27: #{tpu_custom_call.1} parent=5 // pred_region
      // Predicated region
      $region29: #{tpu_custom_call.1} parent=27 // pred_check
        %p153 = pneg %p30
      $region30: #{tpu_custom_call.1} parent=27 // pred_check_branch
        %155 = sbr.rel (%p153) target = $region32
      $region31: #{tpu_custom_call.1} parent=27 // pred_region
        %s156 = smul.u32 3, %s10
        %p157 = scmp.lt.s32.totalorder %s156, 5
        %s158 = scalar_select %p157, %s156, 5
        %s159 = smul.addr %s158, 2
        %s160 = smul.addr %s159, 8
        %s161 = scalar_lea.vmem %s0, %s160
        %s162 = smul.u32 3, %s10
      $region32: #{tpu_custom_call.1} parent=27 // pred_fallthru
        _
    $region28: #{tpu_custom_call.1} parent=5 // pred_fallthru
      _
    %p163 = scmp.le.s32.totalorder 1, %s10
    %p164 = scmp.lt.s32.totalorder %s10, 3
    %p165 = pnand %p163, %p164
    %p166 = pneg %p165
    // Predicated region
    $region33: #{tpu_custom_call.1} parent=5 // pred_check
      _
    $region34: #{tpu_custom_call.1} parent=5 // pred_check_branch
      %168 = sbr.rel (%p165) target = $region36
    $region35: #{tpu_custom_call.1} parent=5 // pred_region
      %s169 = ssub.s32 %s10, 1
      %s170 = smul.u32 3, %s15
      %p171 = scmp.lt.s32.totalorder %s170, 5
      %s172 = scalar_select %p171, %s170, 5
      %s173 = smul.addr %s172, 2
      %s174 = smul.addr %s173, 8
      %s175 = scalar_lea.vmem %s0, %s174
      %p176 = pneg %p36
      %p177 = pneg %p33
      %p178 = pneg %p57
      %p179 = pneg %p54
      %p180 = pneg %p78
      %p181 = pneg %p75
      %p182 = pneg %p99
      %p183 = pneg %p96
      %p184 = pneg %p125
      %p185 = pneg %p122
      %s186 = smul.u32 3, %s15
      %p187 = scmp.lt.s32.totalorder %s186, 5
      %s188 = scalar_select %p187, %s186, 5
      %s189 = smul.addr %s188, 8
      %s190 = scalar_lea.vmem %s4, %s189
      %s191 = smul.u32 3, %s15
      %p192 = scmp.lt.s32.totalorder %s191, 5
      %s193 = scalar_select %p192, %s191, 5
      %s194 = smul.addr %s193, 2
      %s195 = smul.addr %s194, 8
      %s196 = scalar_lea.vmem %s0, %s195
      %s197 = smul.u32 3, %s15
      %s198 = smul.u32 3, %s15
      %p199 = scmp.lt.s32.totalorder %s198, 5
      %s200 = scalar_select %p199, %s198, 5
      %s201 = smul.addr %s200, 8
      %s202 = scalar_lea.vmem %s4, %s201
      %s203 = smul.u32 3, %s15
      %v205 = vld [vmem:[%s196] sm:$0xff]
      %v206 = vld [vmem:[%s196 + $0x8] sm:$0xff]
      %v207 = vld [vmem:[%s196 + $0x10] sm:$0xff]
      %v208 = vld [vmem:[%s196 + $0x18] sm:$0xff]
      %v209 = vld [vmem:[%s196 + $0x20] sm:$0xff]
      %v210 = vld [vmem:[%s196 + $0x28] sm:$0xff]
      %v211 = vld [vmem:[%s1] sm:$0xf]
      %v212 = vld [vmem:[%s1 + $0x4] sm:$0xf]
      %v213 = vld [vmem:[%s1 + $0x8] sm:$0xf]
      %v214 = vld [vmem:[%s1 + $0xc] sm:$0xf]
      %v215 = vld [vmem:[%s1 + $0x10] sm:$0xf]
      %v216 = vld [vmem:[%s1 + $0x14] sm:$0xf]
      %v217 = vld [vmem:[%s1 + $0x18] sm:$0xf]
      %v218 = vld [vmem:[%s1 + $0x1c] sm:$0xf]
      %v219 = vld [vmem:[%s1 + $0x20] sm:$0xf]
      %v220 = vld [vmem:[%s1 + $0x24] sm:$0xf]
      %v221 = vld [vmem:[%s1 + $0x28] sm:$0xf]
      %v222 = vld [vmem:[%s1 + $0x2c] sm:$0xf]
      %v223 = vld [vmem:[%s1 + $0x30] sm:$0xf]
      %v224 = vld [vmem:[%s1 + $0x34] sm:$0xf]
      %v225 = vld [vmem:[%s1 + $0x38] sm:$0xf]
      %v226 = vld [vmem:[%s1 + $0x3c] sm:$0xf]
      %v227 = vld [vmem:[%s1 + $0x40] sm:$0xf]
      %v228 = vld [vmem:[%s1 + $0x44] sm:$0xf]
      %v229 = vld [vmem:[%s1 + $0x48] sm:$0xf]
      %v230 = vld [vmem:[%s1 + $0x4c] sm:$0xf]
      %v231 = vld [vmem:[%s1 + $0x50] sm:$0xf]
      %v232 = vld [vmem:[%s1 + $0x54] sm:$0xf]
      %v233 = vld [vmem:[%s1 + $0x58] sm:$0xf]
      %v234 = vld [vmem:[%s1 + $0x5c] sm:$0xf]
      %v235 = vpack.c.bf16 %v207, %v205
      %v236 = vpack.c.bf16 %v208, %v206
      %v237 = vpack.c.bf16 %v209, %v209
      %v238 = vpack.c.bf16 %v210, %v210
      %v239 = vld [vmem:[%s2] sm:$0x1]
      %v241 = vperm.slane %v239, 0
      %v267 = vunpack.c.l.b16 %v211
      %v268 = vunpack.c.l.b16 %v212
      %v269 = vunpack.c.l.b16 %v213
      %v270 = vunpack.c.l.b16 %v214
      %v271 = vunpack.c.l.b16 %v215
      %v272 = vunpack.c.l.b16 %v216
      %v273 = vunpack.c.l.b16 %v217
      %v274 = vunpack.c.l.b16 %v218
      %v275 = vunpack.c.l.b16 %v219
      %v276 = vunpack.c.l.b16 %v220
      %v277 = vunpack.c.l.b16 %v221
      %v278 = vunpack.c.l.b16 %v222
      %v279 = vunpack.c.l.b16 %v223
      %v280 = vunpack.c.l.b16 %v224
      %v281 = vunpack.c.l.b16 %v225
      %v282 = vunpack.c.l.b16 %v226
      %v283 = vunpack.c.l.b16 %v227
      %v284 = vunpack.c.l.b16 %v228
      %v285 = vunpack.c.l.b16 %v229
      %v286 = vunpack.c.l.b16 %v230
      %v287 = vunpack.c.l.b16 %v231
      %v288 = vunpack.c.l.b16 %v232
      %v289 = vunpack.c.l.b16 %v233
      %v290 = vunpack.c.l.b16 %v234
      %v291 = vpack.c.b16 %v268, %v267
      %v292 = vpack.c.b16 %v270, %v269
      %v293 = vpack.c.b16 %v272, %v271
      %v294 = vpack.c.b16 %v274, %v273
      %v295 = vpack.c.b16 %v276, %v275
      %v296 = vpack.c.b16 %v278, %v277
      %v297 = vpack.c.b16 %v280, %v279
      %v298 = vpack.c.b16 %v282, %v281
      %v299 = vpack.c.b16 %v284, %v283
      %v300 = vpack.c.b16 %v286, %v285
      %v301 = vpack.c.b16 %v288, %v287
      %v302 = vpack.c.b16 %v290, %v289
      %vm315 = vcmask 523264
      %v317 = vsel %vm315, %v236, 0
      %v320 = vsel %vm315, %v238, 0
      %322 = vmatpush.bf16.msra.mxu0 %v298
      %323 = vmatpush.bf16.msra.mxu0 %v297
      %324 = vmatpush.bf16.msra.mxu0 %v296
      %325 = vmatpush.bf16.msra.mxu0 %v295
      %326 = vmatpush.bf16.msra.mxu0 %v294
      %327 = vmatpush.bf16.msra.mxu0 %v293
      %328 = vmatpush.bf16.msra.mxu0 %v292
      %329 = vmatpush.bf16.msra.mxu0 %v291
      %330 = vmatmul.bf16.gmra.mxu0 %v235
      %v331 = vpop.f32.mrf.mxu0
      %v332 = vadd.f32 %v241, %v331
      %v333 = vpop.f32.mrf.mxu0
      %v334 = vadd.f32 %v241, %v333
      %335 = vmatmul.bf16.gmra.mxu0 %v237
      %v336 = vpop.f32.mrf.mxu0
      %v337 = vadd.f32 %v241, %v336
      %v338 = vpop.f32.mrf.mxu0
      %339 = vdwg.mxu0
      %340 = vmatpush.bf16.msra.mxu0 0
      %341 = vmatpush.bf16.msra.mxu0 0
      %342 = vmatpush.bf16.msra.mxu0 0
      %343 = vmatpush.bf16.msra.mxu0 0
      %344 = vmatpush.bf16.msra.mxu0 %v302
      %345 = vmatpush.bf16.msra.mxu0 %v301
      %346 = vmatpush.bf16.msra.mxu0 %v300
      %347 = vmatpush.bf16.msra.mxu0 %v299
      %348 = vmatmul.bf16.gmra.mxu0 %v317
      %v349 = vpop.f32.mrf.mxu0
      %v350 = vadd.f32 %v332, %v349
      %v351 = vpop.f32.mrf.mxu0
      %v352 = vadd.f32 %v334, %v351
      %353 = vmatmul.bf16.gmra.mxu0 %v320
      %v354 = vpop.f32.mrf.mxu0
      %v355 = vadd.f32 %v337, %v354
      %v356 = vpop.f32.mrf.mxu0
      %357 = vdwg.mxu0
      %v358 = vld [vmem:[%s3] sm:$0xff]
      %v359 = vld [vmem:[%s3 + $0x8] sm:$0xff]
      %v360 = vld [vmem:[%s3 + $0x10] sm:$0xff]
      %v361 = vadd.f32 %v350, %v358
      %v362 = vadd.f32 %v352, %v359
      %v363 = vadd.f32 %v355, %v360
      %vm364 = vcmask 261120
      %365 = vst.msk [vmem:[%s202] sm:$0xff] %vm364, %v361
      %366 = vst.msk [vmem:[%s202 + $0x8] sm:$0xff] %vm364, %v362
      %367 = vst.msk [vmem:[%s202 + $0x10] sm:$0xff] %vm364, %v363
      %s368 = smul.u32 3, %s15
      %p369 = scmp.lt.s32.totalorder %s368, 5
      %s370 = scalar_select %p369, %s368, 5
      %s371 = smul.addr %s370, 8
      %s372 = scalar_lea.vmem %s4, %s371
      // Predicated region
      $region37: #{tpu_custom_call.1} parent=35 // pred_check
        %p373 = pneg %p122
      $region38: #{tpu_custom_call.1} parent=35 // pred_check_branch
        %375 = sbr.rel (%p373) target = $region40
      $region39: #{tpu_custom_call.1} parent=35 // pred_region
        %s376 = smul.u32 3, %s15
      $region40: #{tpu_custom_call.1} parent=35 // pred_fallthru
        _
    $region36: #{tpu_custom_call.1} parent=5 // pred_fallthru
      _
    %p377 = scmp.le.s32.totalorder 2, %s10
    // Predicated region
    $region41: #{tpu_custom_call.1} parent=5 // pred_check
      %p378 = pneg %p377
    $region42: #{tpu_custom_call.1} parent=5 // pred_check_branch
      %380 = sbr.rel (%p378) target = $region44
    $region43: #{tpu_custom_call.1} parent=5 // pred_region
      %s381 = ssub.s32 %s10, 2
      // Predicated region
      $region45: #{tpu_custom_call.1} parent=43 // pred_check
        %p382 = pneg %p128
      $region46: #{tpu_custom_call.1} parent=43 // pred_check_branch
        %384 = sbr.rel (%p382) target = $region48
      $region47: #{tpu_custom_call.1} parent=43 // pred_region
        %s385 = smul.u32 3, %s16
        %p386 = scmp.lt.s32.totalorder %s385, 5
        %s387 = scalar_select %p386, %s385, 5
        %s388 = smul.addr %s387, 8
        %s389 = scalar_lea.vmem %s4, %s388
      $region48: #{tpu_custom_call.1} parent=43 // pred_fallthru
        _
    $region44: #{tpu_custom_call.1} parent=5 // pred_fallthru
      _
  $region6: #{tpu_custom_call.1} parent=0 // loop_footer
    %s14 = sadd.s32 1, %s10
  $region7: #{tpu_custom_call.1} parent=0 // loop_footer_branch
    %9 = sbr.rel target = $region3
  $region8: #{tpu_custom_call.1} parent=0 // loop_exit
    _

</llo_original>
